<compile_context>
chip_gen: v5e
topology: v5e:2x2
jax: 0.10.0
libtpu: 0.0.40
codegen_flags: <defaults>
</compile_context>

<pallas_src>
import functools

import jax
import jax.numpy as jnp
from jax import lax
from jax.experimental import pallas as pl
from jax.experimental.pallas import tpu as pltpu


def _round_up(v, mult):
    return ((v + mult - 1) // mult) * mult


def _linear_kernel(x_ref, w_ref, b_ref, o_ref, acc_ref):
    # x_ref: (tm, tk)   w_ref: (tn, tk)   b_ref: (1, tn)
    # o_ref: (tm, tn)   acc_ref: (tm, tn) f32 scratch
    k = pl.program_id(2)

    @pl.when(k == 0)
    def _():
        acc_ref[...] = jnp.zeros_like(acc_ref)

    # Contract last dim of x with last dim of w (i.e. x @ W^T) on the MXU.
    acc_ref[...] += lax.dot_general(
        x_ref[...],
        w_ref[...],
        dimension_numbers=(((1,), (1,)), ((), ())),
        preferred_element_type=jnp.float32,
    )

    @pl.when(k == pl.num_programs(2) - 1)
    def _():
        out = acc_ref[...] + b_ref[...].astype(jnp.float32)  # (1, tn) broadcasts
        o_ref[...] = out.astype(o_ref.dtype)


@functools.partial(jax.jit, static_argnames=("tile_m", "tile_n", "tile_k"))
def linear_forward(x, weight, bias, *, tile_m=512, tile_n=512, tile_k=512):
    """y = x @ weight.T + bias   (weight: (out, in) PyTorch layout, bias: (out,))."""
    assert tile_m % 8 == 0, "tile_m must be a multiple of 8 (sublanes)"
    assert tile_n % 128 == 0, "tile_n must be a multiple of 128 (lanes)"
    assert tile_k % 128 == 0, "tile_k must be a multiple of 128 (lanes)"

    out_features, in_features = weight.shape
    assert x.shape[-1] == in_features

    lead_shape = x.shape[:-1]
    m = 1
    for d in lead_shape:
        m *= d
    x2d = x.reshape(m, in_features)

    # Clamp tiles to (padded) problem size; keep hardware alignment.
    tm = min(tile_m, _round_up(m, 8))
    tn = min(tile_n, _round_up(out_features, 128))
    tk = min(tile_k, _round_up(in_features, 128))

    pm = _round_up(m, tm)
    pn = _round_up(out_features, tn)
    pk = _round_up(in_features, tk)

    # Zero-pad to tile multiples (no-op for already-aligned shapes).
    x_p = jnp.pad(x2d, ((0, pm - m), (0, pk - in_features)))
    w_p = jnp.pad(weight, ((0, pn - out_features), (0, pk - in_features)))
    b_p = jnp.pad(bias, (0, pn - out_features)).reshape(1, pn)

    grid = (pm // tm, pn // tn, pk // tk)

    itemsize = jnp.dtype(x.dtype).itemsize
    cost = pl.CostEstimate(
        flops=2 * m * in_features * out_features,
        transcendentals=0,
        bytes_accessed=(m * in_features + in_features * out_features
                        + m * out_features + out_features) * itemsize,
    )

    out_p = pl.pallas_call(
        _linear_kernel,
        out_shape=jax.ShapeDtypeStruct((pm, pn), x.dtype),
        grid_spec=pltpu.PrefetchScalarGridSpec(
            num_scalar_prefetch=0,
            grid=grid,
            in_specs=[
                pl.BlockSpec((tm, tk), lambda i, j, k: (i, k)),   # x tile
                pl.BlockSpec((tn, tk), lambda i, j, k: (j, k)),   # weight tile (out, in)
                pl.BlockSpec((1, tn), lambda i, j, k: (0, j)),    # bias tile
            ],
            out_specs=pl.BlockSpec((tm, tn), lambda i, j, k: (i, j)),
            scratch_shapes=[pltpu.VMEM((tm, tn), jnp.float32)],
        ),
        compiler_params=pltpu.CompilerParams(
            dimension_semantics=("parallel", "parallel", "arbitrary"),
            vmem_limit_bytes=64 * 1024 * 1024,
        ),
        cost_estimate=cost,
    )(x_p, w_p, b_p)

    out2d = out_p[:m, :out_features]
    return out2d.reshape(*lead_shape, out_features)


def init_linear_params(key, in_features, out_features, dtype=jnp.float32):
    """Deterministic re-implementation of the module's init_params():
       kaiming_normal_ weight (std = sqrt(2 / fan_in)), zero bias."""
    std = (2.0 / in_features) ** 0.5
    weight = std * jax.random.normal(key, (out_features, in_features), dtype=dtype)
    bias = jnp.zeros((out_features,), dtype=dtype)
    return weight, bias


if __name__ == "__main__":
    # Small shapes consistent with a text-feature linear layer:
    batch, seq, in_feat, out_feat = 2, 8, 32, 64

    key = jax.random.PRNGKey(0)
    kx, kw = jax.random.split(key)

    x = jax.random.normal(kx, (batch, seq, in_feat), dtype=jnp.float32)
    weight, bias = init_linear_params(kw, in_feat, out_feat)

    y = linear_forward(x, weight, bias)
    y = jax.block_until_ready(y)

    # Reference check against plain JAX
    y_ref = x @ weight.T + bias
    assert y.shape == (batch, seq, out_feat)
    assert jnp.allclose(y, y_ref, atol=1e-5, rtol=1e-5)

    print("KERNEL_OK")
</pallas_src>

<mosaic_0001>
module attributes {stable_mosaic.version = 11 : i64} {
  func.func @_linear_kernel(%arg0: i32, %arg1: i32, %arg2: i32, %arg3: memref<16x128xf32, #tpu.memory_space<vmem>>, %arg4: memref<128x128xf32, #tpu.memory_space<vmem>>, %arg5: memref<1x128xf32, #tpu.memory_space<vmem>>, %arg6: memref<16x128xf32, #tpu.memory_space<vmem>>, %arg7: memref<16x128xf32, #tpu.memory_space<vmem>>) attributes {dimension_semantics = [#tpu.dimension_semantics<parallel>, #tpu.dimension_semantics<parallel>, #tpu.dimension_semantics<arbitrary>], iteration_bounds = array<i64: 1, 1, 1>, scalar_prefetch = 0 : i64, scratch_operands = 1 : i64, tpu.core_type = #tpu.core_type<tc>, window_params = [{transform_indices = @transform_0, window_bounds = array<i64: 16, 128>}, {transform_indices = @transform_1, window_bounds = array<i64: 128, 128>}, {transform_indices = @transform_2, window_bounds = array<i64: 1, 128>}, {transform_indices = @transform_3, window_bounds = array<i64: 16, 128>}]} {
    %c0_i32 = arith.constant 0 : i32
    %0 = arith.cmpi eq, %arg2, %c0_i32 : i32
    %1 = arith.extui %0 : i1 to i32
    %c0_i32_0 = arith.constant 0 : i32
    %2 = arith.cmpi ne, %1, %c0_i32_0 : i32
    scf.if %2 {
      %cst_10 = arith.constant 0.000000e+00 : f32
      %12 = vector.broadcast %cst_10 : f32 to vector<16x128xf32>
      %c0_11 = arith.constant 0 : index
      %c0_12 = arith.constant 0 : index
      %13 = vector.load %arg7[%c0_11, %c0_12] : memref<16x128xf32, #tpu.memory_space<vmem>>, vector<16x128xf32>
      tpu.vector_store %arg7[%c0_11, %c0_12], %12 {strides = array<i32>} : memref<16x128xf32, #tpu.memory_space<vmem>>, vector<16x128xf32>,
    } else {
    }
    %c0 = arith.constant 0 : index
    %c0_1 = arith.constant 0 : index
    %3 = vector.load %arg7[%c0, %c0_1] : memref<16x128xf32, #tpu.memory_space<vmem>>, vector<16x128xf32>
    %c0_2 = arith.constant 0 : index
    %c0_3 = arith.constant 0 : index
    %4 = vector.load %arg3[%c0_2, %c0_3] : memref<16x128xf32, #tpu.memory_space<vmem>>, vector<16x128xf32>
    %c0_4 = arith.constant 0 : index
    %c0_5 = arith.constant 0 : index
    %5 = vector.load %arg4[%c0_4, %c0_5] : memref<128x128xf32, #tpu.memory_space<vmem>>, vector<128x128xf32>
    %cst = arith.constant dense<0.000000e+00> : vector<16x128xf32>
    %6 = tpu.matmul %4, %5, %cst {dimension_numbers = #tpu.dot_dimension_numbers<[1], [1], [0], [0], [0, 0, 1, 0], [], []>} : vector<16x128xf32>, vector<128x128xf32>, vector<16x128xf32> -> vector<16x128xf32>
    %7 = arith.addf %3, %6 : vector<16x128xf32>
    %c0_6 = arith.constant 0 : index
    %c0_7 = arith.constant 0 : index
    %8 = vector.load %arg7[%c0_6, %c0_7] : memref<16x128xf32, #tpu.memory_space<vmem>>, vector<16x128xf32>
    tpu.vector_store %arg7[%c0_6, %c0_7], %7 {strides = array<i32>} : memref<16x128xf32, #tpu.memory_space<vmem>>, vector<16x128xf32>,
    %c0_i32_8 = arith.constant 0 : i32
    %9 = arith.cmpi eq, %arg2, %c0_i32_8 : i32
    %10 = arith.extui %9 : i1 to i32
    %c0_i32_9 = arith.constant 0 : i32
    %11 = arith.cmpi ne, %10, %c0_i32_9 : i32
    scf.if %11 {
      %c0_10 = arith.constant 0 : index
      %c0_11 = arith.constant 0 : index
      %12 = vector.load %arg7[%c0_10, %c0_11] : memref<16x128xf32, #tpu.memory_space<vmem>>, vector<16x128xf32>
      %c0_12 = arith.constant 0 : index
      %c0_13 = arith.constant 0 : index
      %13 = vector.load %arg5[%c0_12, %c0_13] : memref<1x128xf32, #tpu.memory_space<vmem>>, vector<1x128xf32>
      %14 = vector.broadcast %13 : vector<1x128xf32> to vector<16x128xf32>
      %15 = arith.addf %12, %14 : vector<16x128xf32>
      %c0_14 = arith.constant 0 : index
      %c0_15 = arith.constant 0 : index
      %16 = vector.load %arg6[%c0_14, %c0_15] : memref<16x128xf32, #tpu.memory_space<vmem>>, vector<16x128xf32>
      tpu.vector_store %arg6[%c0_14, %c0_15], %15 {strides = array<i32>} : memref<16x128xf32, #tpu.memory_space<vmem>>, vector<16x128xf32>,
    } else {
    }
    return
  }
  func.func @transform_0(%arg0: i32, %arg1: i32, %arg2: i32) -> (i32, i32) {
    %c0_i32 = arith.constant 0 : i32
    return %arg0, %arg2 : i32, i32
  }
  func.func @transform_1(%arg0: i32, %arg1: i32, %arg2: i32) -> (i32, i32) {
    %c0_i32 = arith.constant 0 : i32
    return %arg1, %arg2 : i32, i32
  }
  func.func @transform_2(%arg0: i32, %arg1: i32, %arg2: i32) -> (i32, i32) {
    %c0_i32 = arith.constant 0 : i32
    %c0_i32_0 = arith.constant 0 : i32
    return %c0_i32, %arg1 : i32, i32
  }
  func.func @transform_3(%arg0: i32, %arg1: i32, %arg2: i32) -> (i32, i32) {
    %c0_i32 = arith.constant 0 : i32
    return %arg0, %arg1 : i32, i32
  }
}

</mosaic_0001>

<llo_original>
// kernel: linear_forward.1
$region0: #{linear_forward.1}
  #allocation0 [shape = 'u32[]', space=smem, size = 0x4, offset = 0x4, fixed_abs, tag = 'smem constant byte address 0x4 - core index']
  #allocation1 [shape = 'u32[72,128]{1,0:T(1,128)}', space=vmem, size = 0x9000, scoped, tag = 'internal scratch']
  #allocation2 [shape = 'f32[16,128]{1,0:T(8,128)}', space=vmem, size = 0x2000, scoped, tag = 'scratch operand']
  %s0 = inlined_call_operand.vmem [shape: f32[16,128], index: 0, kind: input, shape index: {}]
  %s1 = inlined_call_operand.vmem [shape: f32[128,128], index: 1, kind: input, shape index: {}]
  %s2 = inlined_call_operand.vmem [shape: f32[1,128], index: 2, kind: input, shape index: {}]
  %s3 = inlined_call_operand.vmem [shape: f32[16,128], index: 3, kind: output, shape index: {}]
  %s4 = sld [smem:[#allocation0]]
  $region30: #{linear_forward.1} parent=0
    _
  %s6 = ssub.s32 1, %s4
  %s7 = scalar_select 0, %s6, %s4
  // Predicated region
  $region2: #{linear_forward.1} parent=0 // pred_check
    _
  $region3: #{linear_forward.1} parent=0 // pred_check_branch
    %9 = sbr.rel (0) target = $region5
  $region4: #{linear_forward.1} parent=0 // pred_region
    _
  $region5: #{linear_forward.1} parent=0 // pred_fallthru
    _
  // Predicated region
  $region6: #{linear_forward.1} parent=0 // pred_check
    _
  $region7: #{linear_forward.1} parent=0 // pred_check_branch
    %11 = sbr.rel (0) target = $region9
  $region8: #{linear_forward.1} parent=0 // pred_region
    _
  $region9: #{linear_forward.1} parent=0 // pred_fallthru
    _
  // Predicated region
  $region10: #{linear_forward.1} parent=0 // pred_check
    _
  $region11: #{linear_forward.1} parent=0 // pred_check_branch
    %13 = sbr.rel (0) target = $region13
  $region12: #{linear_forward.1} parent=0 // pred_region
    _
  $region13: #{linear_forward.1} parent=0 // pred_fallthru
    _
  %p14 = scmp.eq.s32.totalorder 0, 0
  // Predicated region
  $region14: #{linear_forward.1} parent=0 // pred_check
    %p15 = pneg %p14
  $region15: #{linear_forward.1} parent=0 // pred_check_branch
    %17 = sbr.rel (%p15) target = $region17
  $region16: #{linear_forward.1} parent=0 // pred_region
    %18 = vst [vmem:[#allocation2] sm:$0xff] 0.0
    %19 = vst [vmem:[#allocation2 + $0x8] sm:$0xff] 0.0
  $region17: #{linear_forward.1} parent=0 // pred_fallthru
    _
  %v20 = vld [vmem:[#allocation2] sm:$0xff]
  %v21 = vld [vmem:[#allocation2 + $0x8] sm:$0xff]
  %v22 = vld [vmem:[%s0] sm:$0xff]
  %v23 = vld [vmem:[%s0 + $0x8] sm:$0xff]
  %v24 = vld [vmem:[%s1] sm:$0xff]
  %v25 = vld [vmem:[%s1 + $0x8] sm:$0xff]
  %v26 = vld [vmem:[%s1 + $0x10] sm:$0xff]
  %v27 = vld [vmem:[%s1 + $0x18] sm:$0xff]
  %v28 = vld [vmem:[%s1 + $0x20] sm:$0xff]
  %v29 = vld [vmem:[%s1 + $0x28] sm:$0xff]
  %v30 = vld [vmem:[%s1 + $0x30] sm:$0xff]
  %v31 = vld [vmem:[%s1 + $0x38] sm:$0xff]
  %v32 = vld [vmem:[%s1 + $0x40] sm:$0xff]
  %v33 = vld [vmem:[%s1 + $0x48] sm:$0xff]
  %v34 = vld [vmem:[%s1 + $0x50] sm:$0xff]
  %v35 = vld [vmem:[%s1 + $0x58] sm:$0xff]
  %v36 = vld [vmem:[%s1 + $0x60] sm:$0xff]
  %v37 = vld [vmem:[%s1 + $0x68] sm:$0xff]
  %v38 = vld [vmem:[%s1 + $0x70] sm:$0xff]
  %v39 = vld [vmem:[%s1 + $0x78] sm:$0xff]
  %40 = vmatpush.xpose.msra.mxu0 %v39
  %41 = vmatpush.xpose.msra.mxu0 %v38
  %42 = vmatpush.xpose.msra.mxu0 %v37
  %43 = vmatpush.xpose.msra.mxu0 %v36
  %44 = vmatpush.xpose.msra.mxu0 %v35
  %45 = vmatpush.xpose.msra.mxu0 %v34
  %46 = vmatpush.xpose.msra.mxu0 %v33
  %47 = vmatpush.xpose.msra.mxu0 %v32
  %48 = vmatpush.xpose.msra.mxu0 %v31
  %49 = vmatpush.xpose.msra.mxu0 %v30
  %50 = vmatpush.xpose.msra.mxu0 %v29
  %51 = vmatpush.xpose.msra.mxu0 %v28
  %52 = vmatpush.xpose.msra.mxu0 %v27
  %53 = vmatpush.xpose.msra.mxu0 %v26
  %54 = vmatpush.xpose.msra.mxu0 %v25
  %55 = vmatpush.xpose.msra.mxu0 %v24
  %56 = vmatmul.f32.gmra.mxu0 %v22
  %v57 = vpop.f32.mrf.mxu0
  %v58 = vadd.f32 0.0, %v57
  %59 = vmatmul.f32.gmra.mxu0 %v23
  %v60 = vpop.f32.mrf.mxu0
  %v61 = vadd.f32 0.0, %v60
  %62 = vdwg.mxu0
  %v63 = vadd.f32 %v20, %v58
  %v64 = vadd.f32 %v21, %v61
  %65 = vst [vmem:[#allocation2] sm:$0xff] %v63
  %66 = vst [vmem:[#allocation2 + $0x8] sm:$0xff] %v64
  // Predicated region
  $region18: #{linear_forward.1} parent=0 // pred_check
    %p67 = pneg %p14
  $region19: #{linear_forward.1} parent=0 // pred_check_branch
    %69 = sbr.rel (%p67) target = $region21
  $region20: #{linear_forward.1} parent=0 // pred_region
    %v70 = vld [vmem:[#allocation2] sm:$0xff]
    %v71 = vld [vmem:[#allocation2 + $0x8] sm:$0xff]
    %v72 = vld [vmem:[%s2] sm:$0x1]
    %v74 = vperm.slane %v72, 0
    %v76 = vadd.f32 %v70, %v74
    %v77 = vadd.f32 %v71, %v74
    %78 = vst [vmem:[%s3] sm:$0xff] %v76
    %79 = vst [vmem:[%s3 + $0x8] sm:$0xff] %v77
  $region21: #{linear_forward.1} parent=0 // pred_fallthru
    _
  // Predicated region
  $region22: #{linear_forward.1} parent=0 // pred_check
    _
  $region23: #{linear_forward.1} parent=0 // pred_check_branch
    %81 = sbr.rel (0) target = $region25
  $region24: #{linear_forward.1} parent=0 // pred_region
    _
  $region25: #{linear_forward.1} parent=0 // pred_fallthru
    _
  // Predicated region
  $region26: #{linear_forward.1} parent=0 // pred_check
    _
  $region27: #{linear_forward.1} parent=0 // pred_check_branch
    %83 = sbr.rel (0) target = $region29
  $region28: #{linear_forward.1} parent=0 // pred_region
    _
  $region29: #{linear_forward.1} parent=0 // pred_fallthru
    _

</llo_original>
